<compile_context>
chip_gen: v7x
topology: tpu7x:2x2x1
jax: 0.10.0
libtpu: 0.0.40
codegen_flags: <defaults>
</compile_context>

<pallas_src>
import functools
import math

import jax
import jax.numpy as jnp
from jax.experimental import pallas as pl
from jax.experimental.pallas import tpu as pltpu


# ---------------------------------------------------------------------------
# helpers
# ---------------------------------------------------------------------------
def _round_up(x, m):
    return ((x + m - 1) // m) * m


def _itemsize(dt):
    return jnp.dtype(dt).itemsize


def _sigmoid(x):
    # Explicit exp/divide formulation; overflow of exp(-x) saturates to 0/1.
    return 1.0 / (1.0 + jnp.exp(-x))


def _device_kind():
    try:
        return jax.devices()[0].device_kind.lower()
    except Exception:
        return ""


def _vmem_capacity_bytes():
    try:
        cap = int(pltpu.get_tpu_info().vmem_capacity_bytes)
        if cap > 0:
            return cap
    except Exception:
        pass
    kind = _device_kind()
    if "v5" in kind or "v6" in kind:
        return 128 * 2**20
    return 64 * 2**20            # conservative default (v7x: 64 MiB per TC)


def _bf16_elementwise_ok():
    kind = _device_kind()
    return ("v6" in kind) or ("v7" in kind)   # v5e has no bf16 VPU/EUP


@functools.lru_cache(maxsize=None)
def _single_buffer_weights_supported():
    """One-time feature/lowering check for pl.Buffered(1) grid-invariant inputs."""
    if not hasattr(pl, "Buffered"):
        return False

    def _k(w_ref, o_ref):
        o_ref[...] = w_ref[...] + 1.0

    try:
        spec = pl.BlockSpec((8, 128), lambda i: (0, 0), pipeline_mode=pl.Buffered(1))
        f = pl.pallas_call(
            _k,
            out_shape=jax.ShapeDtypeStruct((16, 128), jnp.float32),
            grid_spec=pltpu.PrefetchScalarGridSpec(
                num_scalar_prefetch=0,
                grid=(2,),
                in_specs=[spec],
                out_specs=pl.BlockSpec((8, 128), lambda i: (i, 0)),
            ),
        )
        jax.block_until_ready(f(jnp.ones((8, 128), jnp.float32)))
        return True
    except Exception:
        return False


# ---------------------------------------------------------------------------
# one-time weight preparation (hoisted out of the per-call path)
# ---------------------------------------------------------------------------
def prepare_glu_weights(w1, b1, w2, b2, *, mxu_dtype=None):
    """Prepare GLU weights once (transpose to [in, out], cast, bias rows).

      w1: [input_dim, context_dim], b1: [input_dim]   (layer1, nn.Linear layout)
      w2: [output_dim, input_dim],  b2: [output_dim]  (layer2, nn.Linear layout)

    mxu_dtype: dtype the matmuls run in (accumulation is always f32).  Pass
    jnp.bfloat16 on v6e/v7x for full MXU throughput; default = w1.dtype.
    """
    mxu_dtype = jnp.dtype(mxu_dtype if mxu_dtype is not None else w1.dtype)
    w1t = jnp.asarray(w1, mxu_dtype).T            # [context_dim, input_dim]
    w2t = jnp.asarray(w2, mxu_dtype).T            # [input_dim,  output_dim]
    b1r = jnp.asarray(b1, jnp.float32).reshape(1, -1)
    b2r = jnp.asarray(b2, jnp.float32).reshape(1, -1)
    return {"w1t": w1t, "b1": b1r, "w2t": w2t, "b2": b2r}


# ---------------------------------------------------------------------------
# kernels
# ---------------------------------------------------------------------------
def _glu_kernel_resident(x_ref, ctx_ref, w1t_ref, b1_ref, w2t_ref, b2_ref,
                         out_ref, *, ew_dtype):
    w1t = w1t_ref[...]
    mxu_dtype = w1t.dtype
    # layer1: gate = sigmoid(context @ W1^T + b1)   (MXU in weight dtype, f32 acc)
    logits = jnp.dot(ctx_ref[...].astype(mxu_dtype), w1t,
                     preferred_element_type=jnp.float32) + b1_ref[...]
    gate = _sigmoid(logits.astype(ew_dtype))
    gated = (gate * x_ref[...].astype(ew_dtype)).astype(mxu_dtype)
    # layer2: out = (gate * x) @ W2^T + b2
    out = jnp.dot(gated, w2t_ref[...],
                  preferred_element_type=jnp.float32) + b2_ref[...]
    out_ref[...] = out.astype(out_ref.dtype)


def _glu_kernel_dtiled(x_ref, ctx_ref, w1t_ref, b1_ref, w2t_ref, b2_ref,
                       out_ref, acc_ref, *, ew_dtype):
    k = pl.program_id(1)

    @pl.when(k == 0)
    def _init():
        acc_ref[...] = jnp.zeros_like(acc_ref)

    w1t = w1t_ref[...]
    mxu_dtype = w1t.dtype
    # gate columns for this input_dim tile (exact: each column lives in one tile)
    logits = jnp.dot(ctx_ref[...].astype(mxu_dtype), w1t,
                     preferred_element_type=jnp.float32) + b1_ref[...]
    gate = _sigmoid(logits.astype(ew_dtype))
    gated = (gate * x_ref[...].astype(ew_dtype)).astype(mxu_dtype)
    acc_ref[...] += jnp.dot(gated, w2t_ref[...],
                            preferred_element_type=jnp.float32)

    @pl.when(k == pl.num_programs(1) - 1)
    def _finalize():
        out_ref[...] = (acc_ref[...] + b2_ref[...]).astype(out_ref.dtype)


# ---------------------------------------------------------------------------
# wrapper
# ---------------------------------------------------------------------------
def glu_fc(x, context, params, *, block_b=None, block_d=None):
    """GLU ('fc') forward: out = (sigmoid(context @ W1^T + b1) * x) @ W2^T + b2.

      x: [B, input_dim], context: [B, context_dim]
      params: output of prepare_glu_weights (prepared once, reused per call)

    Matmuls run in the prepared weight dtype with f32 accumulation; sigmoid /
    gating run in bf16 on v6e/v7x when operands are bf16, else f32.
    """
    w1t, b1r, w2t, b2r = params["w1t"], params["b1"], params["w2t"], params["b2"]
    B, input_dim = x.shape
    Bc, context_dim = context.shape
    assert B == Bc
    assert w1t.shape == (context_dim, input_dim)
    assert w2t.shape[0] == input_dim
    output_dim = w2t.shape[1]

    out_dtype = x.dtype
    mxu_dtype = w1t.dtype

    # elementwise dtype: bf16 only on chips with a bf16 VPU/EUP and bf16 operands
    if (jnp.dtype(mxu_dtype).name == "bfloat16"
            and jnp.dtype(x.dtype).name == "bfloat16"
            and _bf16_elementwise_ok()):
        ew_dtype = jnp.bfloat16
    else:
        ew_dtype = jnp.float32

    # sublane multiple from the narrowest participating dtype
    min_isz = min(_itemsize(x.dtype), _itemsize(context.dtype),
                  _itemsize(mxu_dtype), _itemsize(out_dtype))
    sub = 8 if min_isz >= 4 else 16

    Dc, Di, Do = context_dim, input_dim, output_dim
    x_isz, c_isz, o_isz = _itemsize(x.dtype), _itemsize(context.dtype), _itemsize(out_dtype)
    m_isz, e_isz = _itemsize(mxu_dtype), _itemsize(ew_dtype)

    vmem_cap = _vmem_capacity_bytes()
    budget = int(vmem_cap * 0.85)              # headroom below physical VMEM
    single_buf_w = _single_buffer_weights_supported()

    def resident_bytes(bb):
        w = (1 if single_buf_w else 2) * (Dc * Di + Di * Do) * m_isz + 2 * (Di + Do) * 4
        act = 2 * bb * (Di * x_isz + Dc * c_isz + Do * o_isz)      # double-buffered tiles
        tmp = bb * (Di * (4 + 3 * e_isz) + Do * 4)                 # logits/gate/gated/out temps
        return w + act + tmp

    def dtiled_bytes(bb, bd):
        w = 2 * (Dc * bd + bd * Do) * m_isz + 2 * (bd + Do) * 4
        act = 2 * bb * (bd * x_isz + Dc * c_isz + Do * o_isz)
        tmp = bb * (bd * (4 + 3 * e_isz) + Do * 4) + bb * Do * 4   # + accumulator scratch
        return w + act + tmp

    # ---- batch tile --------------------------------------------------------
    if block_b is None:
        hard_cap = 1024 if vmem_cap >= 96 * 2**20 else 512
        grid_cap = max(sub, _round_up(pl.cdiv(B, 4), sub))  # keep the batch grid multi-step
        bb = min(hard_cap, grid_cap)
    else:
        bb = max(sub, _round_up(int(block_b), sub))
    block_b = bb

    # ---- choose path -------------------------------------------------------
    use_dtiled = block_d is not None
    if not use_dtiled:
        while block_b > sub and resident_bytes(block_b) > budget:
            block_b = max(sub, _round_up(block_b // 2, sub))
        if resident_bytes(block_b) > budget and Di % 128 == 0 and Di > 128:
            use_dtiled = True                 # weights too large to stay VMEM-resident

    if use_dtiled:
        if block_d is None:
            block_d = 128
            for cand in (1024, 512, 256, 128):
                if Di % cand == 0 and dtiled_bytes(block_b, cand) <= budget:
                    block_d = cand
                    break
        assert Di % block_d == 0 and block_d % 128 == 0, (
            "Di-tiled path requires input_dim to be a multiple of block_d (128-multiple)")
        while block_b > sub and dtiled_bytes(block_b, block_d) > budget:
            block_b = max(sub, _round_up(block_b // 2, sub))
        footprint = dtiled_bytes(block_b, block_d)
    else:
        footprint = resident_bytes(block_b)

    vmem_limit = int(min(max(int(footprint * 1.25), 32 * 2**20), budget))

    # ---- batch padding only when needed (no feature-dim pad round trips) ----
    Bp = _round_up(B, block_b)
    if Bp != B:
        x_in = jnp.pad(x, ((0, Bp - B), (0, 0)))
        c_in = jnp.pad(context, ((0, Bp - B), (0, 0)))
    else:
        x_in, c_in = x, context

    cost = pl.CostEstimate(
        flops=2 * Bp * (Dc * Di + Di * Do) + Bp * Di,
        transcendentals=Bp * Di,                      # sigmoid
        bytes_accessed=(Bp * (Di * x_isz + Dc * c_isz + Do * o_isz)
                        + (Dc * Di + Di * Do) * m_isz + (Di + Do) * 4),
    )

    if not use_dtiled:
        wkw = dict(pipeline_mode=pl.Buffered(1)) if single_buf_w else {}
        grid = (Bp // block_b,)
        in_specs = [
            pl.BlockSpec((block_b, Di), lambda i: (i, 0)),          # x
            pl.BlockSpec((block_b, Dc), lambda i: (i, 0)),          # context
            pl.BlockSpec((Dc, Di), lambda i: (0, 0), **wkw),        # W1^T (grid-invariant)
            pl.BlockSpec((1, Di), lambda i: (0, 0)),                # b1
            pl.BlockSpec((Di, Do), lambda i: (0, 0), **wkw),        # W2^T (grid-invariant)
            pl.BlockSpec((1, Do), lambda i: (0, 0)),                # b2
        ]
        out_specs = pl.BlockSpec((block_b, Do), lambda i: (i, 0))
        kernel = functools.partial(_glu_kernel_resident, ew_dtype=ew_dtype)
        scratch = []
        dim_sem = ("parallel",)
    else:
        grid = (Bp // block_b, Di // block_d)
        in_specs = [
            pl.BlockSpec((block_b, block_d), lambda i, k: (i, k)),  # x tile
            pl.BlockSpec((block_b, Dc), lambda i, k: (i, 0)),       # context (same block over k)
            pl.BlockSpec((Dc, block_d), lambda i, k: (0, k)),       # W1^T column tile
            pl.BlockSpec((1, block_d), lambda i, k: (0, k)),        # b1 tile
            pl.BlockSpec((block_d, Do), lambda i, k: (k, 0)),       # W2^T row tile
            pl.BlockSpec((1, Do), lambda i, k: (0, 0)),             # b2
        ]
        out_specs = pl.BlockSpec((block_b, Do), lambda i, k: (i, 0))
        kernel = functools.partial(_glu_kernel_dtiled, ew_dtype=ew_dtype)
        scratch = [pltpu.VMEM((block_b, Do), jnp.float32)]
        dim_sem = ("parallel", "arbitrary")

    out_p = pl.pallas_call(
        kernel,
        out_shape=jax.ShapeDtypeStruct((Bp, Do), out_dtype),
        grid_spec=pltpu.PrefetchScalarGridSpec(
            num_scalar_prefetch=0,
            grid=grid,
            in_specs=in_specs,
            out_specs=out_specs,
            scratch_shapes=scratch,
        ),
        compiler_params=pltpu.CompilerParams(
            dimension_semantics=dim_sem,
            vmem_limit_bytes=vmem_limit,
        ),
        cost_estimate=cost,
    )(x_in, c_in, w1t, b1r, w2t, b2r)

    return out_p if Bp == B else out_p[:B]


# ---------------------------------------------------------------------------
# demo / self-test
# ---------------------------------------------------------------------------
def _torch_linear_init(key, out_features, in_features):
    """Deterministic init mimicking nn.Linear default: U(-1/sqrt(in), 1/sqrt(in))."""
    kw, kb = jax.random.split(key)
    bound = 1.0 / math.sqrt(in_features)
    w = jax.random.uniform(kw, (out_features, in_features), jnp.float32, -bound, bound)
    b = jax.random.uniform(kb, (out_features,), jnp.float32, -bound, bound)
    return w, b


def _reference_glu(x, context, w1, b1, w2, b2):
    hp = jax.lax.Precision.HIGHEST
    gate = jax.nn.sigmoid(jnp.dot(context, w1.T, precision=hp) + b1)
    return jnp.dot(gate * x, w2.T, precision=hp) + b2


if __name__ == "__main__":
    key = jax.random.PRNGKey(0)
    kx, kc, k1, k2, kx2, kc2, kx3, kc3, k3, k4 = jax.random.split(key, 10)

    # --- Test 1: f32, non-lane-aligned dims, weight-resident path, grid=(2,) ---
    B, input_dim, output_dim, context_dim = 16, 64, 48, 32
    x = jax.random.normal(kx, (B, input_dim), jnp.float32)
    context = jax.random.normal(kc, (B, context_dim), jnp.float32)
    w1, b1 = _torch_linear_init(k1, input_dim, context_dim)   # layer1: ctx_dim -> in_dim
    w2, b2 = _torch_linear_init(k2, output_dim, input_dim)    # layer2: in_dim  -> out_dim
    params = prepare_glu_weights(w1, b1, w2, b2)               # one-time prep

    out = jax.block_until_ready(glu_fc(x, context, params, block_b=8))
    ref = _reference_glu(x, context, w1, b1, w2, b2)
    assert out.shape == (B, output_dim)
    assert jnp.allclose(out, ref, atol=1e-3, rtol=1e-3), \
        float(jnp.max(jnp.abs(out - ref)))

    # --- Test 2: bf16 operands (bf16 MXU; bf16 elementwise on v6e/v7x) ---
    B2, D_in2, D_out2, D_ctx2 = 64, 256, 128, 128
    x2 = jax.random.normal(kx2, (B2, D_in2), jnp.float32).astype(jnp.bfloat16)
    c2 = jax.random.normal(kc2, (B2, D_ctx2), jnp.float32).astype(jnp.bfloat16)
    w1b, b1b = _torch_linear_init(k3, D_in2, D_ctx2)
    w2b, b2b = _torch_linear_init(k4, D_out2, D_in2)
    params2 = prepare_glu_weights(w1b, b1b, w2b, b2b, mxu_dtype=jnp.bfloat16)

    out2 = jax.block_until_ready(glu_fc(x2, c2, params2, block_b=16))
    ref2 = _reference_glu(x2.astype(jnp.float32), c2.astype(jnp.float32),
                          w1b.astype(jnp.bfloat16).astype(jnp.float32), b1b,
                          w2b.astype(jnp.bfloat16).astype(jnp.float32), b2b)
    assert out2.shape == (B2, D_out2)
    assert jnp.allclose(out2.astype(jnp.float32), ref2, atol=7.5e-2, rtol=5e-2), \
        float(jnp.max(jnp.abs(out2.astype(jnp.float32) - ref2)))

    # --- Test 3: Di-tiled accumulator path (2-D grid, f32 scratch accumulator) ---
    B3, D_in3, D_out3, D_ctx3 = 32, 256, 128, 128
    x3 = jax.random.normal(kx3, (B3, D_in3), jnp.float32)
    c3 = jax.random.normal(kc3, (B3, D_ctx3), jnp.float32)
    w13, b13 = _torch_linear_init(k1, D_in3, D_ctx3)
    w23, b23 = _torch_linear_init(k2, D_out3, D_in3)
    params3 = prepare_glu_weights(w13, b13, w23, b23)

    out3 = jax.block_until_ready(glu_fc(x3, c3, params3, block_b=16, block_d=128))
    ref3 = _reference_glu(x3, c3, w13, b13, w23, b23)
    assert out3.shape == (B3, D_out3)
    assert jnp.allclose(out3, ref3, atol=1e-3, rtol=1e-3), \
        float(jnp.max(jnp.abs(out3 - ref3)))

    print("KERNEL_OK")
</pallas_src>

<mosaic_0001>
module attributes {stable_mosaic.version = 11 : i64} {
  func.func @_k(%arg0: i32, %arg1: memref<8x128xf32, #tpu.memory_space<vmem>>, %arg2: memref<8x128xf32, #tpu.memory_space<vmem>>) attributes {dimension_semantics = [#tpu.dimension_semantics<arbitrary>], iteration_bounds = array<i64: 2>, scalar_prefetch = 0 : i64, scratch_operands = 0 : i64, tpu.core_type = #tpu.core_type<tc>, window_params = [{pipeline_mode = #tpu.pipeline_mode<synchronous>, transform_indices = @transform_0, window_bounds = array<i64: 8, 128>}, {transform_indices = @transform_1, window_bounds = array<i64: 8, 128>}]} {
    %c0 = arith.constant 0 : index
    %c0_0 = arith.constant 0 : index
    %0 = vector.load %arg1[%c0, %c0_0] : memref<8x128xf32, #tpu.memory_space<vmem>>, vector<8x128xf32>
    %cst = arith.constant 1.000000e+00 : f32
    %1 = vector.broadcast %cst : f32 to vector<8x128xf32>
    %2 = arith.addf %0, %1 : vector<8x128xf32>
    %c0_1 = arith.constant 0 : index
    %c0_2 = arith.constant 0 : index
    %3 = vector.load %arg2[%c0_1, %c0_2] : memref<8x128xf32, #tpu.memory_space<vmem>>, vector<8x128xf32>
    tpu.vector_store %arg2[%c0_1, %c0_2], %2 {strides = array<i32>} : memref<8x128xf32, #tpu.memory_space<vmem>>, vector<8x128xf32>,
    return
  }
  func.func @transform_0(%arg0: i32) -> (i32, i32) {
    %c0_i32 = arith.constant 0 : i32
    %c0_i32_0 = arith.constant 0 : i32
    %c0_i32_1 = arith.constant 0 : i32
    return %c0_i32, %c0_i32_0 : i32, i32
  }
  func.func @transform_1(%arg0: i32) -> (i32, i32) {
    %c0_i32 = arith.constant 0 : i32
    %c0_i32_0 = arith.constant 0 : i32
    return %arg0, %c0_i32 : i32, i32
  }
}

module attributes {stable_mosaic.version = 11 : i64} {
  func.func @_glu_kernel_resident(%arg0: i32, %arg1: memref<8x64xf32, #tpu.memory_space<vmem>>, %arg2: memref<8x32xf32, #tpu.memory_space<vmem>>, %arg3: memref<32x64xf32, #tpu.memory_space<vmem>>, %arg4: memref<1x64xf32, #tpu.memory_space<vmem>>, %arg5: memref<64x48xf32, #tpu.memory_space<vmem>>, %arg6: memref<1x48xf32, #tpu.memory_space<vmem>>, %arg7: memref<8x48xf32, #tpu.memory_space<vmem>>) attributes {dimension_semantics = [#tpu.dimension_semantics<parallel>], iteration_bounds = array<i64: 2>, scalar_prefetch = 0 : i64, scratch_operands = 0 : i64, tpu.core_type = #tpu.core_type<tc>, window_params = [{transform_indices = @transform_0, window_bounds = array<i64: 8, 64>}, {transform_indices = @transform_1, window_bounds = array<i64: 8, 32>}, {pipeline_mode = #tpu.pipeline_mode<synchronous>, transform_indices = @transform_2, window_bounds = array<i64: 32, 64>}, {pipeline_mode = #tpu.pipeline_mode<synchronous>, transform_indices = @transform_3, window_bounds = array<i64: 1, 64>}, {pipeline_mode = #tpu.pipeline_mode<synchronous>, transform_indices = @transform_4, window_bounds = array<i64: 64, 48>}, {pipeline_mode = #tpu.pipeline_mode<synchronous>, transform_indices = @transform_5, window_bounds = array<i64: 1, 48>}, {transform_indices = @transform_6, window_bounds = array<i64: 8, 48>}]} {
    %c0 = arith.constant 0 : index
    %c0_0 = arith.constant 0 : index
    %0 = vector.load %arg3[%c0, %c0_0] : memref<32x64xf32, #tpu.memory_space<vmem>>, vector<32x64xf32>
    %c0_1 = arith.constant 0 : index
    %c0_2 = arith.constant 0 : index
    %1 = vector.load %arg2[%c0_1, %c0_2] : memref<8x32xf32, #tpu.memory_space<vmem>>, vector<8x32xf32>
    %cst = arith.constant dense<0.000000e+00> : vector<8x64xf32>
    %2 = tpu.matmul %1, %0, %cst {dimension_numbers = #tpu.dot_dimension_numbers<[1], [0], [0], [1], [0, 0, 1, 1], [], []>} : vector<8x32xf32>, vector<32x64xf32>, vector<8x64xf32> -> vector<8x64xf32>
    %c0_3 = arith.constant 0 : index
    %c0_4 = arith.constant 0 : index
    %3 = vector.load %arg4[%c0_3, %c0_4] : memref<1x64xf32, #tpu.memory_space<vmem>>, vector<1x64xf32>
    %4 = vector.broadcast %3 : vector<1x64xf32> to vector<8x64xf32>
    %5 = arith.addf %2, %4 : vector<8x64xf32>
    %cst_5 = arith.constant 0.000000e+00 : f32
    %6 = vector.broadcast %cst_5 : f32 to vector<8x64xf32>
    %7 = arith.subf %6, %5 : vector<8x64xf32>
    %8 = math.exp %7 : vector<8x64xf32>
    %cst_6 = arith.constant 1.000000e+00 : f32
    %9 = vector.broadcast %cst_6 : f32 to vector<8x64xf32>
    %10 = arith.addf %9, %8 : vector<8x64xf32>
    %cst_7 = arith.constant 1.000000e+00 : f32
    %11 = vector.broadcast %cst_7 : f32 to vector<8x64xf32>
    %12 = arith.divf %11, %10 : vector<8x64xf32>
    %c0_8 = arith.constant 0 : index
    %c0_9 = arith.constant 0 : index
    %13 = vector.load %arg1[%c0_8, %c0_9] : memref<8x64xf32, #tpu.memory_space<vmem>>, vector<8x64xf32>
    %14 = arith.mulf %12, %13 : vector<8x64xf32>
    %c0_10 = arith.constant 0 : index
    %c0_11 = arith.constant 0 : index
    %15 = vector.load %arg5[%c0_10, %c0_11] : memref<64x48xf32, #tpu.memory_space<vmem>>, vector<64x48xf32>
    %cst_12 = arith.constant dense<0.000000e+00> : vector<8x48xf32>
    %16 = tpu.matmul %14, %15, %cst_12 {dimension_numbers = #tpu.dot_dimension_numbers<[1], [0], [0], [1], [0, 0, 1, 1], [], []>} : vector<8x64xf32>, vector<64x48xf32>, vector<8x48xf32> -> vector<8x48xf32>
    %c0_13 = arith.constant 0 : index
    %c0_14 = arith.constant 0 : index
    %17 = vector.load %arg6[%c0_13, %c0_14] : memref<1x48xf32, #tpu.memory_space<vmem>>, vector<1x48xf32>
    %18 = vector.broadcast %17 : vector<1x48xf32> to vector<8x48xf32>
    %19 = arith.addf %16, %18 : vector<8x48xf32>
    %c0_15 = arith.constant 0 : index
    %c0_16 = arith.constant 0 : index
    %20 = vector.load %arg7[%c0_15, %c0_16] : memref<8x48xf32, #tpu.memory_space<vmem>>, vector<8x48xf32>
    tpu.vector_store %arg7[%c0_15, %c0_16], %19 {strides = array<i32>} : memref<8x48xf32, #tpu.memory_space<vmem>>, vector<8x48xf32>,
    return
  }
  func.func @transform_0(%arg0: i32) -> (i32, i32) {
    %c0_i32 = arith.constant 0 : i32
    %c0_i32_0 = arith.constant 0 : i32
    return %arg0, %c0_i32 : i32, i32
  }
  func.func @transform_1(%arg0: i32) -> (i32, i32) {
    %c0_i32 = arith.constant 0 : i32
    %c0_i32_0 = arith.constant 0 : i32
    return %arg0, %c0_i32 : i32, i32
  }
  func.func @transform_2(%arg0: i32) -> (i32, i32) {
    %c0_i32 = arith.constant 0 : i32
    %c0_i32_0 = arith.constant 0 : i32
    %c0_i32_1 = arith.constant 0 : i32
    return %c0_i32, %c0_i32_0 : i32, i32
  }
  func.func @transform_3(%arg0: i32) -> (i32, i32) {
    %c0_i32 = arith.constant 0 : i32
    %c0_i32_0 = arith.constant 0 : i32
    %c0_i32_1 = arith.constant 0 : i32
    return %c0_i32, %c0_i32_0 : i32, i32
  }
  func.func @transform_4(%arg0: i32) -> (i32, i32) {
    %c0_i32 = arith.constant 0 : i32
    %c0_i32_0 = arith.constant 0 : i32
    %c0_i32_1 = arith.constant 0 : i32
    return %c0_i32, %c0_i32_0 : i32, i32
  }
  func.func @transform_5(%arg0: i32) -> (i32, i32) {
    %c0_i32 = arith.constant 0 : i32
    %c0_i32_0 = arith.constant 0 : i32
    %c0_i32_1 = arith.constant 0 : i32
    return %c0_i32, %c0_i32_0 : i32, i32
  }
  func.func @transform_6(%arg0: i32) -> (i32, i32) {
    %c0_i32 = arith.constant 0 : i32
    %c0_i32_0 = arith.constant 0 : i32
    return %arg0, %c0_i32 : i32, i32
  }
}

</mosaic_0001>

<llo_original>
// kernel: tpu_custom_call.1
$region0: #{tpu_custom_call.1}
  #allocation0 [shape = 'u32[]', space=smem, size = 0x4, offset = 0x4, fixed_abs, tag = 'smem constant byte address 0x4 - core index']
  #allocation1 [shape = 'u32[144,128]{1,0:T(1,128)}', space=vmem, size = 0x12000, scoped, tag = 'internal scratch']
  %s0 = inlined_call_operand.hbm [shape: f32[8,128], index: 0, kind: input, shape index: {}]
  %s1 = inlined_call_operand.hbm [shape: f32[16,128], index: 1, kind: output, shape index: {}]
  %s2 = sld [smem:[#allocation0]]
  $region41: #{tpu_custom_call.1} parent=0
    _
  %s4 = ssub.s32 1, %s2
  %s5 = scalar_select 0, %s4, %s2
  $region1: #{tpu_custom_call.1} parent=0
    #allocation2 [shape = 'u8[4096]{0}', space=vmem, size = 0x1000, scoped, tag = 'input window, operand 0, single buffered']
    #allocation3 [shape = 's32[2]{0}', space=sflag, size = 0x8, scoped, tag = 'scoped memory for tpu_custom_call.1']
    #allocation4 [shape = 's32[2]{0}', space=sflag, size = 0x8, scoped, tag = 'scoped memory for tpu_custom_call.1']
    #allocation5 [shape = 'u8[8192]{0}', space=vmem, size = 0x2000, scoped, tag = 'output window, operand 0']
    %6 = vsyncpa [#allocation3], 0
    %7 = vsyncpa [#allocation4], 0
    %s8 = scalar_lea.sflag [#allocation4], 1
    %9 = vsyncpa %s8, 0
    loop: start=0, step=1, limit=4
    $region2: #{tpu_custom_call.1} parent=1 // loop_pre_header
      _
    $region3: #{tpu_custom_call.1} parent=1 // loop_header
      %s11 = sphi 0, %s15
      %p12 = scmp.ge.s32.totalorder %s11, 4
      %s19 = sphi 0, %s19
      %s21 = sphi 0, %s19
      %s22 = sphi 0, %s21
      %s36 = sphi 0, %s22
      %s42 = sphi 0, %s44
      %s45 = sphi 0, %s42
      %s46 = sphi 0, %s45
      %s62 = sphi 0, %s46
    $region4: #{tpu_custom_call.1} parent=1 // loop_header_branch
      %14 = sbr.rel (%p12) target = $region8
    $region5: #{tpu_custom_call.1} parent=1 // loop_body
      %s16 = ssub.s32 %s11, 1
      %s17 = ssub.s32 %s11, 2
      %s18 = sadd.s32 %s11, 1
      %s20 = sadd.s32 %s19, 1
      %p23 = scmp.eq.s32.totalorder %s11, 1
      %p24 = scmp.ne.s32.totalorder %s19, %s21
      %p25 = scmp.eq.s32.totalorder %s11, 0
      %p26 = por %p24, %p25
      %p27 = scmp.ne.s32.totalorder %s19, %s21
      %p28 = scmp.eq.s32.totalorder %s16, 1
      %p29 = por %p27, %p28
      %p30 = scmp.ne.s32.totalorder %s21, %s22
      %p31 = scmp.eq.s32.totalorder %s16, 0
      %p32 = por %p30, %p31
      %p33 = scmp.ne.s32.totalorder %s21, %s22
      %p34 = scmp.eq.s32.totalorder %s17, 1
      %p35 = por %p33, %p34
      %p37 = scmp.ne.s32.totalorder %s22, %s36
      %p38 = scmp.eq.s32.totalorder %s17, 0
      %p39 = por %p37, %p38
      %s40 = ssub.s32 %s11, %s18
      %p41 = scmp.eq.s32.totalorder %s40, 0
      %s43 = sadd.s32 %s42, 1
      %s44 = scalar_select %p41, %s42, %s43
      %p47 = pneg %p41
      %p48 = scmp.eq.s32.totalorder %s11, 1
      %p49 = por %p47, %p48
      %p50 = scmp.ne.s32.totalorder %s42, %s45
      %p51 = scmp.eq.s32.totalorder %s11, 0
      %p52 = por %p50, %p51
      %p53 = scmp.ne.s32.totalorder %s42, %s45
      %p54 = scmp.eq.s32.totalorder %s16, 1
      %p55 = por %p53, %p54
      %p56 = scmp.ne.s32.totalorder %s45, %s46
      %p57 = scmp.eq.s32.totalorder %s16, 0
      %p58 = por %p56, %p57
      %p59 = scmp.ne.s32.totalorder %s45, %s46
      %p60 = scmp.eq.s32.totalorder %s17, 1
      %p61 = por %p59, %p60
      %p63 = scmp.ne.s32.totalorder %s46, %s62
      %p64 = scmp.eq.s32.totalorder %s17, 0
      %p65 = por %p63, %p64
      %p66 = scmp.le.s32.totalorder 1, %s11
      %p67 = scmp.lt.s32.totalorder %s11, 3
      %p68 = pnand %p66, %p67
      %p69 = pneg %p68
      // Predicated region
      $region9: #{tpu_custom_call.1} parent=5 // pred_check
        _
      $region10: #{tpu_custom_call.1} parent=5 // pred_check_branch
        %71 = sbr.rel (%p68) target = $region12
      $region11: #{tpu_custom_call.1} parent=5 // pred_region
        %s72 = ssub.s32 %s11, 1
        // Predicated region
        $region13: #{tpu_custom_call.1} parent=11 // pred_check
          %p73 = pneg %p32
        $region14: #{tpu_custom_call.1} parent=11 // pred_check_branch
          %75 = sbr.rel (%p73) target = $region16
        $region15: #{tpu_custom_call.1} parent=11 // pred_region
          %s77 = ssub.s32 128, 128
          %78 = vsyncadd [#allocation3], %s77
          %s80 = sshll.u32 [#allocation2], 4
          %s81 = int_to_ptr.vmem [resolvable:$true] %s80
          %83 = dma.hbm_to_vmem [thread:$0]  %s0, 128, %s81, [#allocation3]
        $region16: #{tpu_custom_call.1} parent=11 // pred_fallthru
          _
      $region12: #{tpu_custom_call.1} parent=5 // pred_fallthru
        _
      %p84 = scmp.lt.s32.totalorder %s11, 2
      // Predicated region
      $region17: #{tpu_custom_call.1} parent=5 // pred_check
        %p85 = pneg %p84
      $region18: #{tpu_custom_call.1} parent=5 // pred_check_branch
        %87 = sbr.rel (%p85) target = $region20
      $region19: #{tpu_custom_call.1} parent=5 // pred_region
        _
      $region20: #{tpu_custom_call.1} parent=5 // pred_fallthru
        _
      %p88 = scmp.le.s32.totalorder 1, %s11
      %p89 = scmp.lt.s32.totalorder %s11, 3
      %p90 = pnand %p88, %p89
      %p91 = pneg %p90
      // Predicated region
      $region21: #{tpu_custom_call.1} parent=5 // pred_check
        _
      $region22: #{tpu_custom_call.1} parent=5 // pred_check_branch
        %93 = sbr.rel (%p90) target = $region24
      $region23: #{tpu_custom_call.1} parent=5 // pred_region
        %s94 = ssub.s32 %s11, 1
        // Predicated region
        $region25: #{tpu_custom_call.1} parent=23 // pred_check
          %p95 = pneg %p32
        $region26: #{tpu_custom_call.1} parent=23 // pred_check_branch
          %97 = sbr.rel (%p95) target = $region28
        $region27: #{tpu_custom_call.1} parent=23 // pred_region
          %98 = dma.done [#allocation3], 128
        $region28: #{tpu_custom_call.1} parent=23 // pred_fallthru
          _
        %p99 = pneg %p32
        %p100 = pneg %p29
        %p101 = pneg %p58
        %p102 = pneg %p55
        %s103 = sand.u32 %s45, 1
        %s104 = scalar_lea.sflag [#allocation4], %s103
        %s105 = sand.u32 %s45, 1
        %s106 = smul.addr %s105, 8
        %s107 = scalar_lea.vmem [#allocation5], %s106
        %v108 = vld [vmem:[#allocation2] sm:$0xff]
        %v109 = vadd.f32 %v108, 1.0
        %110 = vst [vmem:[%s107] sm:$0xff] %v109
        %s111 = sand.u32 %s45, 1
        %s112 = scalar_lea.sflag [#allocation4], %s111
        %s113 = sand.u32 %s45, 1
        %s114 = smul.addr %s113, 8
        %s115 = scalar_lea.vmem [#allocation5], %s114
        // Predicated region
        $region29: #{tpu_custom_call.1} parent=23 // pred_check
          %p116 = pneg %p55
        $region30: #{tpu_custom_call.1} parent=23 // pred_check_branch
          %118 = sbr.rel (%p116) target = $region32
        $region31: #{tpu_custom_call.1} parent=23 // pred_region
          %s120 = ssub.s32 128, 128
          %121 = vsyncadd %s112, %s120
          %s122 = smul.addr %s16, 128
          %s123 = scalar_lea.hbm %s1, %s122
          %s125 = sshll.u32 %s115, 4
          %s126 = int_to_ptr.vmem [resolvable:$true] %s125
          %128 = dma.vmem_to_hbm [thread:$0]  %s126, 128, %s123, %s112
        $region32: #{tpu_custom_call.1} parent=23 // pred_fallthru
          _
      $region24: #{tpu_custom_call.1} parent=5 // pred_fallthru
        _
      %p129 = scmp.le.s32.totalorder 2, %s11
      // Predicated region
      $region33: #{tpu_custom_call.1} parent=5 // pred_check
        %p130 = pneg %p129
      $region34: #{tpu_custom_call.1} parent=5 // pred_check_branch
        %132 = sbr.rel (%p130) target = $region36
      $region35: #{tpu_custom_call.1} parent=5 // pred_region
        %s133 = ssub.s32 %s11, 2
        // Predicated region
        $region37: #{tpu_custom_call.1} parent=35 // pred_check
          %p134 = pneg %p61
        $region38: #{tpu_custom_call.1} parent=35 // pred_check_branch
          %136 = sbr.rel (%p134) target = $region40
        $region39: #{tpu_custom_call.1} parent=35 // pred_region
          %s137 = sand.u32 %s46, 1
          %s138 = scalar_lea.sflag [#allocation4], %s137
          %s139 = sand.u32 %s46, 1
          %s140 = smul.addr %s139, 8
          %s141 = scalar_lea.vmem [#allocation5], %s140
          %142 = dma.done %s138, 128
        $region40: #{tpu_custom_call.1} parent=35 // pred_fallthru
          _
      $region36: #{tpu_custom_call.1} parent=5 // pred_fallthru
        _
    $region6: #{tpu_custom_call.1} parent=1 // loop_footer
      %s15 = sadd.s32 1, %s11
    $region7: #{tpu_custom_call.1} parent=1 // loop_footer_branch
      %10 = sbr.rel target = $region3
    $region8: #{tpu_custom_call.1} parent=1 // loop_exit
      _
    %143 = vsyncpa [#allocation3], 1
    %s144 = scalar_lea.sflag [#allocation3], 1
    %145 = vsyncpa %s144, 1
    %146 = vsyncpa [#allocation4], 1
    %s147 = scalar_lea.sflag [#allocation4], 1
    %148 = vsyncpa %s147, 1

// kernel: tpu_custom_call.1
$region0: #{tpu_custom_call.1}
  #allocation0 [shape = 'u32[]', space=smem, size = 0x4, offset = 0x4, fixed_abs, tag = 'smem constant byte address 0x4 - core index']
  #allocation1 [shape = 'u32[144,128]{1,0:T(1,128)}', space=vmem, size = 0x12000, scoped, tag = 'internal scratch']
  %s0 = inlined_call_operand.vmem [shape: f32[16,64], index: 0, kind: input, shape index: {}]
  %s1 = inlined_call_operand.vmem [shape: f32[16,32], index: 1, kind: input, shape index: {}]
  %s2 = inlined_call_operand.vmem [shape: f32[32,64], index: 2, kind: input, shape index: {}]
  %s3 = inlined_call_operand.vmem [shape: f32[1,64], index: 3, kind: input, shape index: {}]
  %s4 = inlined_call_operand.vmem [shape: f32[64,48], index: 4, kind: input, shape index: {}]
  %s5 = inlined_call_operand.vmem [shape: f32[1,48], index: 5, kind: input, shape index: {}]
  %s6 = inlined_call_operand.hbm [shape: f32[16,48], index: 6, kind: output, shape index: {}]
  %s7 = sld [smem:[#allocation0]]
  $region57: #{tpu_custom_call.1} parent=0
    _
  %s9 = ssub.s32 1, %s7
  %s10 = scalar_select 0, %s9, %s7
  $region1: #{tpu_custom_call.1} parent=0
    #allocation2 [shape = 'u8[8192]{0}', space=vmem, size = 0x2000, scoped, tag = 'output window, operand 0']
    #allocation3 [shape = 's32[2]{0}', space=sflag, size = 0x8, scoped, tag = 'scoped memory for tpu_custom_call.1']
    %11 = vsyncpa [#allocation3], 0
    %s12 = scalar_lea.sflag [#allocation3], 1
    %13 = vsyncpa %s12, 0
    loop: start=0, step=1, limit=4
    $region2: #{tpu_custom_call.1} parent=1 // loop_pre_header
      _
    $region3: #{tpu_custom_call.1} parent=1 // loop_header
      %s15 = sphi 0, %s19
      %p16 = scmp.ge.s32.totalorder %s15, 4
      %s25 = sphi 0, %s27
      %s28 = sphi 0, %s25
      %s29 = sphi 0, %s28
      %s45 = sphi 0, %s29
      %s51 = sphi 0, %s53
      %s54 = sphi 0, %s51
      %s55 = sphi 0, %s54
      %s71 = sphi 0, %s55
      %s75 = sphi 0, %s75
      %s77 = sphi 0, %s75
      %s78 = sphi 0, %s77
      %s92 = sphi 0, %s78
      %s96 = sphi 0, %s96
      %s98 = sphi 0, %s96
      %s99 = sphi 0, %s98
      %s113 = sphi 0, %s99
      %s117 = sphi 0, %s117
      %s119 = sphi 0, %s117
      %s120 = sphi 0, %s119
      %s134 = sphi 0, %s120
      %s138 = sphi 0, %s138
      %s140 = sphi 0, %s138
      %s141 = sphi 0, %s140
      %s155 = sphi 0, %s141
      %s161 = sphi 0, %s163
      %s164 = sphi 0, %s161
      %s165 = sphi 0, %s164
      %s181 = sphi 0, %s165
    $region4: #{tpu_custom_call.1} parent=1 // loop_header_branch
      %18 = sbr.rel (%p16) target = $region8
    $region5: #{tpu_custom_call.1} parent=1 // loop_body
      %s20 = ssub.s32 %s15, 1
      %s21 = ssub.s32 %s15, 2
      %s22 = sadd.s32 %s15, 1
      %s23 = ssub.s32 %s15, %s22
      %p24 = scmp.eq.s32.totalorder %s23, 0
      %s26 = sadd.s32 %s25, 1
      %s27 = scalar_select %p24, %s25, %s26
      %p30 = pneg %p24
      %p31 = scmp.eq.s32.totalorder %s15, 1
      %p32 = por %p30, %p31
      %p33 = scmp.ne.s32.totalorder %s25, %s28
      %p34 = scmp.eq.s32.totalorder %s15, 0
      %p35 = por %p33, %p34
      %p36 = scmp.ne.s32.totalorder %s25, %s28
      %p37 = scmp.eq.s32.totalorder %s20, 1
      %p38 = por %p36, %p37
      %p39 = scmp.ne.s32.totalorder %s28, %s29
      %p40 = scmp.eq.s32.totalorder %s20, 0
      %p41 = por %p39, %p40
      %p42 = scmp.ne.s32.totalorder %s28, %s29
      %p43 = scmp.eq.s32.totalorder %s21, 1
      %p44 = por %p42, %p43
      %p46 = scmp.ne.s32.totalorder %s29, %s45
      %p47 = scmp.eq.s32.totalorder %s21, 0
      %p48 = por %p46, %p47
      %s49 = ssub.s32 %s15, %s22
      %p50 = scmp.eq.s32.totalorder %s49, 0
      %s52 = sadd.s32 %s51, 1
      %s53 = scalar_select %p50, %s51, %s52
      %p56 = pneg %p50
      %p57 = scmp.eq.s32.totalorder %s15, 1
      %p58 = por %p56, %p57
      %p59 = scmp.ne.s32.totalorder %s51, %s54
      %p60 = scmp.eq.s32.totalorder %s15, 0
      %p61 = por %p59, %p60
      %p62 = scmp.ne.s32.totalorder %s51, %s54
      %p63 = scmp.eq.s32.totalorder %s20, 1
      %p64 = por %p62, %p63
      %p65 = scmp.ne.s32.totalorder %s54, %s55
      %p66 = scmp.eq.s32.totalorder %s20, 0
      %p67 = por %p65, %p66
      %p68 = scmp.ne.s32.totalorder %s54, %s55
      %p69 = scmp.eq.s32.totalorder %s21, 1
      %p70 = por %p68, %p69
      %p72 = scmp.ne.s32.totalorder %s55, %s71
      %p73 = scmp.eq.s32.totalorder %s21, 0
      %p74 = por %p72, %p73
      %s76 = sadd.s32 %s75, 1
      %p79 = scmp.eq.s32.totalorder %s15, 1
      %p80 = scmp.ne.s32.totalorder %s75, %s77
      %p81 = scmp.eq.s32.totalorder %s15, 0
      %p82 = por %p80, %p81
      %p83 = scmp.ne.s32.totalorder %s75, %s77
      %p84 = scmp.eq.s32.totalorder %s20, 1
      %p85 = por %p83, %p84
      %p86 = scmp.ne.s32.totalorder %s77, %s78
      %p87 = scmp.eq.s32.totalorder %s20, 0
      %p88 = por %p86, %p87
      %p89 = scmp.ne.s32.totalorder %s77, %s78
      %p90 = scmp.eq.s32.totalorder %s21, 1
      %p91 = por %p89, %p90
      %p93 = scmp.ne.s32.totalorder %s78, %s92
      %p94 = scmp.eq.s32.totalorder %s21, 0
      %p95 = por %p93, %p94
      %s97 = sadd.s32 %s96, 1
      %p100 = scmp.eq.s32.totalorder %s15, 1
      %p101 = scmp.ne.s32.totalorder %s96, %s98
      %p102 = scmp.eq.s32.totalorder %s15, 0
      %p103 = por %p101, %p102
      %p104 = scmp.ne.s32.totalorder %s96, %s98
      %p105 = scmp.eq.s32.totalorder %s20, 1
      %p106 = por %p104, %p105
      %p107 = scmp.ne.s32.totalorder %s98, %s99
      %p108 = scmp.eq.s32.totalorder %s20, 0
      %p109 = por %p107, %p108
      %p110 = scmp.ne.s32.totalorder %s98, %s99
      %p111 = scmp.eq.s32.totalorder %s21, 1
      %p112 = por %p110, %p111
      %p114 = scmp.ne.s32.totalorder %s99, %s113
      %p115 = scmp.eq.s32.totalorder %s21, 0
      %p116 = por %p114, %p115
      %s118 = sadd.s32 %s117, 1
      %p121 = scmp.eq.s32.totalorder %s15, 1
      %p122 = scmp.ne.s32.totalorder %s117, %s119
      %p123 = scmp.eq.s32.totalorder %s15, 0
      %p124 = por %p122, %p123
      %p125 = scmp.ne.s32.totalorder %s117, %s119
      %p126 = scmp.eq.s32.totalorder %s20, 1
      %p127 = por %p125, %p126
      %p128 = scmp.ne.s32.totalorder %s119, %s120
      %p129 = scmp.eq.s32.totalorder %s20, 0
      %p130 = por %p128, %p129
      %p131 = scmp.ne.s32.totalorder %s119, %s120
      %p132 = scmp.eq.s32.totalorder %s21, 1
      %p133 = por %p131, %p132
      %p135 = scmp.ne.s32.totalorder %s120, %s134
      %p136 = scmp.eq.s32.totalorder %s21, 0
      %p137 = por %p135, %p136
      %s139 = sadd.s32 %s138, 1
      %p142 = scmp.eq.s32.totalorder %s15, 1
      %p143 = scmp.ne.s32.totalorder %s138, %s140
      %p144 = scmp.eq.s32.totalorder %s15, 0
      %p145 = por %p143, %p144
      %p146 = scmp.ne.s32.totalorder %s138, %s140
      %p147 = scmp.eq.s32.totalorder %s20, 1
      %p148 = por %p146, %p147
      %p149 = scmp.ne.s32.totalorder %s140, %s141
      %p150 = scmp.eq.s32.totalorder %s20, 0
      %p151 = por %p149, %p150
      %p152 = scmp.ne.s32.totalorder %s140, %s141
      %p153 = scmp.eq.s32.totalorder %s21, 1
      %p154 = por %p152, %p153
      %p156 = scmp.ne.s32.totalorder %s141, %s155
      %p157 = scmp.eq.s32.totalorder %s21, 0
      %p158 = por %p156, %p157
      %s159 = ssub.s32 %s15, %s22
      %p160 = scmp.eq.s32.totalorder %s159, 0
      %s162 = sadd.s32 %s161, 1
      %s163 = scalar_select %p160, %s161, %s162
      %p166 = pneg %p160
      %p167 = scmp.eq.s32.totalorder %s15, 1
      %p168 = por %p166, %p167
      %p169 = scmp.ne.s32.totalorder %s161, %s164
      %p170 = scmp.eq.s32.totalorder %s15, 0
      %p171 = por %p169, %p170
      %p172 = scmp.ne.s32.totalorder %s161, %s164
      %p173 = scmp.eq.s32.totalorder %s20, 1
      %p174 = por %p172, %p173
      %p175 = scmp.ne.s32.totalorder %s164, %s165
      %p176 = scmp.eq.s32.totalorder %s20, 0
      %p177 = por %p175, %p176
      %p178 = scmp.ne.s32.totalorder %s164, %s165
      %p179 = scmp.eq.s32.totalorder %s21, 1
      %p180 = por %p178, %p179
      %p182 = scmp.ne.s32.totalorder %s165, %s181
      %p183 = scmp.eq.s32.totalorder %s21, 0
      %p184 = por %p182, %p183
      %p185 = scmp.le.s32.totalorder 1, %s15
      %p186 = scmp.lt.s32.totalorder %s15, 3
      %p187 = pnand %p185, %p186
      %p188 = pneg %p187
      // Predicated region
      $region9: #{tpu_custom_call.1} parent=5 // pred_check
        _
      $region10: #{tpu_custom_call.1} parent=5 // pred_check_branch
        %190 = sbr.rel (%p187) target = $region12
      $region11: #{tpu_custom_call.1} parent=5 // pred_region
        %s191 = ssub.s32 %s15, 1
        // Predicated region
        $region13: #{tpu_custom_call.1} parent=11 // pred_check
          %p192 = pneg %p88
        $region14: #{tpu_custom_call.1} parent=11 // pred_check_branch
          %194 = sbr.rel (%p192) target = $region16
        $region15: #{tpu_custom_call.1} parent=11 // pred_region
          _
        $region16: #{tpu_custom_call.1} parent=11 // pred_fallthru
          _
        // Predicated region
        $region17: #{tpu_custom_call.1} parent=11 // pred_check
          %p195 = pneg %p109
        $region18: #{tpu_custom_call.1} parent=11 // pred_check_branch
          %197 = sbr.rel (%p195) target = $region20
        $region19: #{tpu_custom_call.1} parent=11 // pred_region
          _
        $region20: #{tpu_custom_call.1} parent=11 // pred_fallthru
          _
        // Predicated region
        $region21: #{tpu_custom_call.1} parent=11 // pred_check
          %p198 = pneg %p130
        $region22: #{tpu_custom_call.1} parent=11 // pred_check_branch
          %200 = sbr.rel (%p198) target = $region24
        $region23: #{tpu_custom_call.1} parent=11 // pred_region
          _
        $region24: #{tpu_custom_call.1} parent=11 // pred_fallthru
          _
        // Predicated region
        $region25: #{tpu_custom_call.1} parent=11 // pred_check
          %p201 = pneg %p151
        $region26: #{tpu_custom_call.1} parent=11 // pred_check_branch
          %203 = sbr.rel (%p201) target = $region28
        $region27: #{tpu_custom_call.1} parent=11 // pred_region
          _
        $region28: #{tpu_custom_call.1} parent=11 // pred_fallthru
          _
      $region12: #{tpu_custom_call.1} parent=5 // pred_fallthru
        _
      %p204 = scmp.lt.s32.totalorder %s15, 2
      // Predicated region
      $region29: #{tpu_custom_call.1} parent=5 // pred_check
        %p205 = pneg %p204
      $region30: #{tpu_custom_call.1} parent=5 // pred_check_branch
        %207 = sbr.rel (%p205) target = $region32
      $region31: #{tpu_custom_call.1} parent=5 // pred_region
        // Predicated region
        $region33: #{tpu_custom_call.1} parent=31 // pred_check
          %p208 = pneg %p35
        $region34: #{tpu_custom_call.1} parent=31 // pred_check_branch
          %210 = sbr.rel (%p208) target = $region36
        $region35: #{tpu_custom_call.1} parent=31 // pred_region
          %p211 = scmp.lt.s32.totalorder %s15, 1
          %s212 = scalar_select %p211, %s15, 1
          %s213 = smul.addr %s212, 8
          %s214 = scalar_lea.vmem %s0, %s213
        $region36: #{tpu_custom_call.1} parent=31 // pred_fallthru
          _
        // Predicated region
        $region37: #{tpu_custom_call.1} parent=31 // pred_check
          %p215 = pneg %p61
        $region38: #{tpu_custom_call.1} parent=31 // pred_check_branch
          %217 = sbr.rel (%p215) target = $region40
        $region39: #{tpu_custom_call.1} parent=31 // pred_region
          %p218 = scmp.lt.s32.totalorder %s15, 1
          %s219 = scalar_select %p218, %s15, 1
          %s220 = smul.addr %s219, 8
          %s221 = scalar_lea.vmem %s1, %s220
        $region40: #{tpu_custom_call.1} parent=31 // pred_fallthru
          _
      $region32: #{tpu_custom_call.1} parent=5 // pred_fallthru
        _
      %p222 = scmp.le.s32.totalorder 1, %s15
      %p223 = scmp.lt.s32.totalorder %s15, 3
      %p224 = pnand %p222, %p223
      %p225 = pneg %p224
      // Predicated region
      $region41: #{tpu_custom_call.1} parent=5 // pred_check
        _
      $region42: #{tpu_custom_call.1} parent=5 // pred_check_branch
        %227 = sbr.rel (%p224) target = $region44
      $region43: #{tpu_custom_call.1} parent=5 // pred_region
        %s228 = ssub.s32 %s15, 1
        %p229 = scmp.lt.s32.totalorder %s20, 1
        %s230 = scalar_select %p229, %s20, 1
        %s231 = smul.addr %s230, 8
        %s232 = scalar_lea.vmem %s0, %s231
        %p233 = pneg %p41
        %p234 = pneg %p38
        %p235 = scmp.lt.s32.totalorder %s20, 1
        %s236 = scalar_select %p235, %s20, 1
        %s237 = smul.addr %s236, 8
        %s238 = scalar_lea.vmem %s1, %s237
        %p239 = pneg %p67
        %p240 = pneg %p64
        %p241 = pneg %p88
        %p242 = pneg %p85
        %p243 = pneg %p109
        %p244 = pneg %p106
        %p245 = pneg %p130
        %p246 = pneg %p127
        %p247 = pneg %p151
        %p248 = pneg %p148
        %p249 = pneg %p177
        %p250 = pneg %p174
        %s251 = sand.u32 %s164, 1
        %s252 = scalar_lea.sflag [#allocation3], %s251
        %s253 = sand.u32 %s164, 1
        %s254 = smul.addr %s253, 8
        %s255 = scalar_lea.vmem [#allocation2], %s254
        %p256 = scmp.lt.s32.totalorder %s20, 1
        %s257 = scalar_select %p256, %s20, 1
        %s258 = smul.addr %s257, 8
        %s259 = scalar_lea.vmem %s0, %s258
        %p260 = scmp.lt.s32.totalorder %s20, 1
        %s261 = scalar_select %p260, %s20, 1
        %s262 = smul.addr %s261, 8
        %s263 = scalar_lea.vmem %s1, %s262
        %v264 = vld [vmem:[%s2] sm:$0xff]
        %v265 = vld [vmem:[%s2 + $0x8] sm:$0xff]
        %v266 = vld [vmem:[%s2 + $0x10] sm:$0xff]
        %v267 = vld [vmem:[%s2 + $0x18] sm:$0xff]
        %v268 = vld [vmem:[%s263] sm:$0xff]
        %v269 = vld [vmem:[%s3] sm:$0x1]
        %v271 = vlaneseq
        %v272 = vshrl.u32 %v271, 7
        %v273 = vsub.s32 0, %v272
        %v274 = vrot.slane %v269, %v273
        %vm276 = vcmask 261120
        %v278 = vsel %vm276, %v268, 0
        %280 = vmatprep.subr.mxu0 0.0
        %281 = vmatpush1.msra.mxu0 %v264
        %282 = vmatprep.subr.mxu0 0.0
        %283 = vmatpush1.msra.mxu0 %v265
        %284 = vmatprep.subr.mxu0 0.0
        %285 = vmatpush1.msra.mxu0 %v266
        %286 = vmatprep.subr.mxu0 0.0
        %287 = vmatpush1.msra.mxu0 %v267
        %288 = vmatprep.subr.mxu0 0.0
        %289 = vmatpush1.msra.mxu0 0.0
        %290 = vmatprep.subr.mxu0 0.0
        %291 = vmatpush1.msra.mxu0 0.0
        %292 = vmatprep.subr.mxu0 0.0
        %293 = vmatpush1.msra.mxu0 0.0
        %294 = vmatprep.subr.mxu0 0.0
        %295 = vmatpush1.msra.mxu0 0.0
        %296 = vmatprep.subr.mxu0 0.0
        %297 = vmatpush1.msra.mxu0 0.0
        %298 = vmatprep.subr.mxu0 0.0
        %299 = vmatpush1.msra.mxu0 0.0
        %300 = vmatprep.subr.mxu0 0.0
        %301 = vmatpush1.msra.mxu0 0.0
        %302 = vmatprep.subr.mxu0 0.0
        %303 = vmatpush1.msra.mxu0 0.0
        %304 = vmatprep.subr.mxu0 0.0
        %305 = vmatpush1.msra.mxu0 0.0
        %306 = vmatprep.subr.mxu0 0.0
        %307 = vmatpush1.msra.mxu0 0.0
        %308 = vmatprep.subr.mxu0 0.0
        %309 = vmatpush1.msra.mxu0 0.0
        %310 = vmatprep.subr.mxu0 0.0
        %311 = vmatpush1.msra.mxu0 0.0
        %312 = vmatprep.subr.mxu0 0.0
        %313 = vmatpush1.msra.mxu0 0.0
        %314 = vmatprep.subr.mxu0 0.0
        %315 = vmatpush1.msra.mxu0 0.0
        %316 = vmatprep.subr.mxu0 0.0
        %317 = vmatpush1.msra.mxu0 0.0
        %318 = vmatprep.subr.mxu0 0.0
        %319 = vmatpush1.msra.mxu0 0.0
        %320 = vmatprep.subr.mxu0 0.0
        %321 = vmatpush1.msra.mxu0 0.0
        %322 = vmatprep.subr.mxu0 0.0
        %323 = vmatpush1.msra.mxu0 0.0
        %324 = vmatprep.subr.mxu0 0.0
        %325 = vmatpush1.msra.mxu0 0.0
        %326 = vmatprep.subr.mxu0 0.0
        %327 = vmatpush1.msra.mxu0 0.0
        %328 = vmatprep.subr.mxu0 0.0
        %329 = vmatpush1.msra.mxu0 0.0
        %330 = vmatprep.subr.mxu0 0.0
        %331 = vmatpush1.msra.mxu0 0.0
        %332 = vmatprep.subr.mxu0 0.0
        %333 = vmatpush1.msra.mxu0 0.0
        %334 = vmatprep.subr.mxu0 0.0
        %335 = vmatpush1.msra.mxu0 0.0
        %336 = vmatprep.subr.mxu0 0.0
        %337 = vmatpush1.msra.mxu0 0.0
        %338 = vmatprep.subr.mxu0 0.0
        %339 = vmatpush1.msra.mxu0 0.0
        %340 = vmatprep.subr.mxu0 0.0
        %341 = vmatpush1.msra.mxu0 0.0
        %342 = vmatprep.subr.mxu0 0.0
        %343 = vmatpush1.msra.mxu0 0.0
        %344 = vmatprep.mubr.f32.mxu0 0.0
        %345 = vmatmul.mubr.f32.gmra.mrb[0].mxu0 %v278
        %v346 = vpop.f32.mrb[0].mxu0
        %v347 = vadd.f32 %v274, %v346
        %v348 = vpop.f32.mrb[0].mxu0
        %349 = vdwg.mxu0
        %v350 = vsub.f32 0.0, %v347
        %v351 = vmul.f32 %v350, 1.442695
        %v352 = vpow.pop %v351
        %v353 = vadd.f32 %v352, 1.0
        %v354 = vrcp.pop %v353
        %v355 = vmul.f32 1.0, %v354
        %v356 = vld [vmem:[%s259] sm:$0xff]
        %v357 = vmul.f32 %v355, %v356
        %v358 = vld [vmem:[%s4] sm:$0xff]
        %v359 = vld [vmem:[%s4 + $0x8] sm:$0xff]
        %v360 = vld [vmem:[%s4 + $0x10] sm:$0xff]
        %v361 = vld [vmem:[%s4 + $0x18] sm:$0xff]
        %v362 = vld [vmem:[%s4 + $0x20] sm:$0xff]
        %v363 = vld [vmem:[%s4 + $0x28] sm:$0xff]
        %v364 = vld [vmem:[%s4 + $0x30] sm:$0xff]
        %v365 = vld [vmem:[%s4 + $0x38] sm:$0xff]
        %v366 = vld [vmem:[%s5] sm:$0x1]
        %v368 = vlaneseq
        %v369 = vshrl.u32 %v368, 7
        %v370 = vsub.s32 0, %v369
        %v371 = vrot.slane %v366, %v370
        %vm373 = vcmask 523264
        %v375 = vsel %vm373, %v357, 0
        %377 = vmatprep.subr.mxu0 0.0
        %378 = vmatpush1.msra.mxu0 %v358
        %379 = vmatprep.subr.mxu0 0.0
        %380 = vmatpush1.msra.mxu0 %v359
        %381 = vmatprep.subr.mxu0 0.0
        %382 = vmatpush1.msra.mxu0 %v360
        %383 = vmatprep.subr.mxu0 0.0
        %384 = vmatpush1.msra.mxu0 %v361
        %385 = vmatprep.subr.mxu0 0.0
        %386 = vmatpush1.msra.mxu0 %v362
        %387 = vmatprep.subr.mxu0 0.0
        %388 = vmatpush1.msra.mxu0 %v363
        %389 = vmatprep.subr.mxu0 0.0
        %390 = vmatpush1.msra.mxu0 %v364
        %391 = vmatprep.subr.mxu0 0.0
        %392 = vmatpush1.msra.mxu0 %v365
        %393 = vmatprep.subr.mxu0 0.0
        %394 = vmatpush1.msra.mxu0 0.0
        %395 = vmatprep.subr.mxu0 0.0
        %396 = vmatpush1.msra.mxu0 0.0
        %397 = vmatprep.subr.mxu0 0.0
        %398 = vmatpush1.msra.mxu0 0.0
        %399 = vmatprep.subr.mxu0 0.0
        %400 = vmatpush1.msra.mxu0 0.0
        %401 = vmatprep.subr.mxu0 0.0
        %402 = vmatpush1.msra.mxu0 0.0
        %403 = vmatprep.subr.mxu0 0.0
        %404 = vmatpush1.msra.mxu0 0.0
        %405 = vmatprep.subr.mxu0 0.0
        %406 = vmatpush1.msra.mxu0 0.0
        %407 = vmatprep.subr.mxu0 0.0
        %408 = vmatpush1.msra.mxu0 0.0
        %409 = vmatprep.subr.mxu0 0.0
        %410 = vmatpush1.msra.mxu0 0.0
        %411 = vmatprep.subr.mxu0 0.0
        %412 = vmatpush1.msra.mxu0 0.0
        %413 = vmatprep.subr.mxu0 0.0
        %414 = vmatpush1.msra.mxu0 0.0
        %415 = vmatprep.subr.mxu0 0.0
        %416 = vmatpush1.msra.mxu0 0.0
        %417 = vmatprep.subr.mxu0 0.0
        %418 = vmatpush1.msra.mxu0 0.0
        %419 = vmatprep.subr.mxu0 0.0
        %420 = vmatpush1.msra.mxu0 0.0
        %421 = vmatprep.subr.mxu0 0.0
        %422 = vmatpush1.msra.mxu0 0.0
        %423 = vmatprep.subr.mxu0 0.0
        %424 = vmatpush1.msra.mxu0 0.0
        %425 = vmatprep.subr.mxu0 0.0
        %426 = vmatpush1.msra.mxu0 0.0
        %427 = vmatprep.subr.mxu0 0.0
        %428 = vmatpush1.msra.mxu0 0.0
        %429 = vmatprep.subr.mxu0 0.0
        %430 = vmatpush1.msra.mxu0 0.0
        %431 = vmatprep.subr.mxu0 0.0
        %432 = vmatpush1.msra.mxu0 0.0
        %433 = vmatprep.subr.mxu0 0.0
        %434 = vmatpush1.msra.mxu0 0.0
        %435 = vmatprep.subr.mxu0 0.0
        %436 = vmatpush1.msra.mxu0 0.0
        %437 = vmatprep.subr.mxu0 0.0
        %438 = vmatpush1.msra.mxu0 0.0
        %439 = vmatprep.subr.mxu0 0.0
        %440 = vmatpush1.msra.mxu0 0.0
        %441 = vmatprep.mubr.f32.mxu0 0.0
        %442 = vmatmul.mubr.f32.gmra.mrb[0].mxu0 %v375
        %v443 = vpop.f32.mrb[0].mxu0
        %v444 = vadd.f32 %v371, %v443
        %v445 = vpop.f32.mrb[0].mxu0
        %446 = vdwg.mxu0
        %vm447 = vcmask 392192
        %448 = vst.msk [vmem:[%s255] sm:$0xff] %vm447, %v444
        %s449 = sand.u32 %s164, 1
        %s450 = scalar_lea.sflag [#allocation3], %s449
        %s451 = sand.u32 %s164, 1
        %s452 = smul.addr %s451, 8
        %s453 = scalar_lea.vmem [#allocation2], %s452
        // Predicated region
        $region45: #{tpu_custom_call.1} parent=43 // pred_check
          %p454 = pneg %p174
        $region46: #{tpu_custom_call.1} parent=43 // pred_check_branch
          %456 = sbr.rel (%p454) target = $region48
        $region47: #{tpu_custom_call.1} parent=43 // pred_region
          %s458 = ssub.s32 128, 128
          %459 = vsyncadd %s450, %s458
          %s460 = smul.addr %s20, 128
          %s461 = scalar_lea.hbm %s6, %s460
          %s463 = sshll.u32 %s453, 4
          %s464 = int_to_ptr.vmem [resolvable:$true] %s463
          %466 = dma.vmem_to_hbm [thread:$0]  %s464, 128, %s461, %s450
        $region48: #{tpu_custom_call.1} parent=43 // pred_fallthru
          _
      $region44: #{tpu_custom_call.1} parent=5 // pred_fallthru
        _
      %p467 = scmp.le.s32.totalorder 2, %s15
      // Predicated region
      $region49: #{tpu_custom_call.1} parent=5 // pred_check
        %p468 = pneg %p467
      $region50: #{tpu_custom_call.1} parent=5 // pred_check_branch
        %470 = sbr.rel (%p468) target = $region52
      $region51: #{tpu_custom_call.1} parent=5 // pred_region
        %s471 = ssub.s32 %s15, 2
        // Predicated region
        $region53: #{tpu_custom_call.1} parent=51 // pred_check
          %p472 = pneg %p180
        $region54: #{tpu_custom_call.1} parent=51 // pred_check_branch
          %474 = sbr.rel (%p472) target = $region56
        $region55: #{tpu_custom_call.1} parent=51 // pred_region
          %s475 = sand.u32 %s165, 1
          %s476 = scalar_lea.sflag [#allocation3], %s475
          %s477 = sand.u32 %s165, 1
          %s478 = smul.addr %s477, 8
          %s479 = scalar_lea.vmem [#allocation2], %s478
          %480 = dma.done %s476, 128
        $region56: #{tpu_custom_call.1} parent=51 // pred_fallthru
          _
      $region52: #{tpu_custom_call.1} parent=5 // pred_fallthru
        _
    $region6: #{tpu_custom_call.1} parent=1 // loop_footer
      %s19 = sadd.s32 1, %s15
    $region7: #{tpu_custom_call.1} parent=1 // loop_footer_branch
      %14 = sbr.rel target = $region3
    $region8: #{tpu_custom_call.1} parent=1 // loop_exit
      _
    %481 = vsyncpa [#allocation3], 1
    %s482 = scalar_lea.sflag [#allocation3], 1
    %483 = vsyncpa %s482, 1

</llo_original>
